<compile_context>
chip_gen: v7x
topology: tpu7x:2x2x1
jax: 0.10.0
libtpu: 0.0.40
codegen_flags: <defaults>
</compile_context>

<pallas_src>
import functools

import jax
import jax.numpy as jnp
from jax.experimental import pallas as pl
from jax.experimental.pallas import tpu as pltpu


HEAD_WIDTH = 128  # lane-dense fused-head / output width (one full f32 lane tile)


def actor_critic_kernel(x_ref, w1_ref, b1_ref, w2_ref, b2_ref,
                        wh_ref, bh_ref, out_ref, *, out_dim):
    x = x_ref[...]

    # layer1 + ReLU
    h1 = jnp.dot(x, w1_ref[...], preferred_element_type=jnp.float32) + b1_ref[...]
    h1 = jnp.maximum(h1, 0.0)

    # layer2 + ReLU
    h2 = jnp.dot(h1, w2_ref[...], preferred_element_type=jnp.float32) + b2_ref[...]
    h2 = jnp.maximum(h2, 0.0)

    # fused actor+critic head: one (B,128) x (128,128) matmul on the MXU.
    head = jnp.dot(h2, wh_ref[...], preferred_element_type=jnp.float32) + bh_ref[...]

    # lane layout: [0, out_dim) = actor logits, out_dim = critic value, rest = pad
    lane = jax.lax.broadcasted_iota(jnp.int32, head.shape, dimension=1)
    is_actor = lane < out_dim

    # numerically-stable softmax over the actor lanes only
    logits = jnp.where(is_actor, head, -jnp.inf)
    m = jnp.max(logits, axis=-1, keepdims=True)
    e = jnp.exp(logits - m)                      # exp(-inf) = 0 on padded lanes
    denom = jnp.sum(e, axis=-1, keepdims=True)
    probs = e * pl.reciprocal(denom, approx=True)  # EUP reciprocal, VALU-free

    # single unmasked lane-dense store: probs | value | zeros
    out_ref[...] = jnp.where(lane == out_dim, head, probs)


def actor_critic_forward(x, params):
    (w1, b1, w2, b2, wa, ba, wc, bc) = params
    B = x.shape[0]
    out_dim = wa.shape[1]
    hidden = wa.shape[0]
    assert out_dim + 1 <= HEAD_WIDTH, "actor+critic heads must fit in 128 lanes"

    # Fuse actor + critic weights/biases into one zero-padded (hidden, 128) head.
    w_head = jnp.zeros((hidden, HEAD_WIDTH), jnp.float32)
    w_head = w_head.at[:, :out_dim].set(wa)
    w_head = w_head.at[:, out_dim:out_dim + 1].set(wc)
    b_head = jnp.zeros((1, HEAD_WIDTH), jnp.float32)
    b_head = b_head.at[:, :out_dim].set(ba)
    b_head = b_head.at[:, out_dim:out_dim + 1].set(bc)

    vmem = pl.BlockSpec(memory_space=pltpu.MemorySpace.VMEM)
    out = pl.pallas_call(
        functools.partial(actor_critic_kernel, out_dim=out_dim),
        out_shape=jax.ShapeDtypeStruct((B, HEAD_WIDTH), jnp.float32),
        in_specs=[vmem] * 7,
        out_specs=vmem,
    )(x, w1, b1, w2, b2, w_head, b_head)

    # free wrapper-side slicing of the lane-dense block
    probs = out[:, :out_dim]
    value = out[:, out_dim:out_dim + 1]
    return probs, value


def init_params(key, input_dim, output_dim, hidden=128):
    """Deterministic param init; weights stored as (in, out), biases as (1, out)."""
    ks = jax.random.split(key, 8)

    def lin(kw, kb, fan_in, fan_out):
        bound = 1.0 / jnp.sqrt(fan_in)
        w = jax.random.uniform(kw, (fan_in, fan_out), jnp.float32, -bound, bound)
        b = jax.random.uniform(kb, (1, fan_out), jnp.float32, -bound, bound)
        return w, b

    w1, b1 = lin(ks[0], ks[1], input_dim, hidden)
    w2, b2 = lin(ks[2], ks[3], hidden, hidden)
    wa, ba = lin(ks[4], ks[5], hidden, output_dim)
    wc, bc = lin(ks[6], ks[7], hidden, 1)
    return (w1, b1, w2, b2, wa, ba, wc, bc)


def reference_forward(x, params):
    (w1, b1, w2, b2, wa, ba, wc, bc) = params
    h1 = jax.nn.relu(x @ w1 + b1)
    h2 = jax.nn.relu(h1 @ w2 + b2)
    probs = jax.nn.softmax(h2 @ wa + ba, axis=-1)
    value = h2 @ wc + bc
    return probs, value


if __name__ == "__main__":
    key = jax.random.PRNGKey(0)
    input_dim, output_dim, batch = 32, 16, 8  # batch = 8 -> one full f32 sublane tile

    k_params, k_x = jax.random.split(key)
    params = init_params(k_params, input_dim, output_dim)
    x = jax.random.normal(k_x, (batch, input_dim), dtype=jnp.float32)

    probs, values = jax.block_until_ready(
        jax.jit(actor_critic_forward)(x, params)
    )

    # sanity check against a pure-JAX reference
    ref_probs, ref_values = reference_forward(x, params)
    assert probs.shape == (batch, output_dim)
    assert values.shape == (batch, 1)
    # probs use the approximate EUP reciprocal -> slightly looser tolerance
    assert jnp.allclose(probs, ref_probs, atol=1e-3, rtol=1e-2)
    # critic value is exact f32 math
    assert jnp.allclose(values, ref_values, atol=1e-5, rtol=1e-5)
    assert jnp.allclose(jnp.sum(probs, axis=-1), 1.0, atol=1e-2)

    print("KERNEL_OK")
</pallas_src>

<mosaic_0001>
module attributes {stable_mosaic.version = 11 : i64} {
  func.func @actor_critic_kernel(%arg0: memref<8x32xf32, #tpu.memory_space<vmem>>, %arg1: memref<32x128xf32, #tpu.memory_space<vmem>>, %arg2: memref<1x128xf32, #tpu.memory_space<vmem>>, %arg3: memref<128x128xf32, #tpu.memory_space<vmem>>, %arg4: memref<1x128xf32, #tpu.memory_space<vmem>>, %arg5: memref<128x128xf32, #tpu.memory_space<vmem>>, %arg6: memref<1x128xf32, #tpu.memory_space<vmem>>, %arg7: memref<8x128xf32, #tpu.memory_space<vmem>>) attributes {dimension_semantics = [], scalar_prefetch = 0 : i64, scratch_operands = 0 : i64, tpu.core_type = #tpu.core_type<tc>} {
    %c0 = arith.constant 0 : index
    %c0_0 = arith.constant 0 : index
    %0 = vector.load %arg0[%c0, %c0_0] : memref<8x32xf32, #tpu.memory_space<vmem>>, vector<8x32xf32>
    %c0_1 = arith.constant 0 : index
    %c0_2 = arith.constant 0 : index
    %1 = vector.load %arg1[%c0_1, %c0_2] : memref<32x128xf32, #tpu.memory_space<vmem>>, vector<32x128xf32>
    %cst = arith.constant dense<0.000000e+00> : vector<8x128xf32>
    %2 = tpu.matmul %0, %1, %cst {dimension_numbers = #tpu.dot_dimension_numbers<[1], [0], [0], [1], [0, 0, 1, 1], [], []>} : vector<8x32xf32>, vector<32x128xf32>, vector<8x128xf32> -> vector<8x128xf32>
    %c0_3 = arith.constant 0 : index
    %c0_4 = arith.constant 0 : index
    %3 = vector.load %arg2[%c0_3, %c0_4] : memref<1x128xf32, #tpu.memory_space<vmem>>, vector<1x128xf32>
    %4 = vector.broadcast %3 : vector<1x128xf32> to vector<8x128xf32>
    %5 = arith.addf %2, %4 : vector<8x128xf32>
    %cst_5 = arith.constant 0.000000e+00 : f32
    %6 = vector.broadcast %cst_5 : f32 to vector<8x128xf32>
    %7 = arith.maximumf %5, %6 : vector<8x128xf32>
    %c0_6 = arith.constant 0 : index
    %c0_7 = arith.constant 0 : index
    %8 = vector.load %arg3[%c0_6, %c0_7] : memref<128x128xf32, #tpu.memory_space<vmem>>, vector<128x128xf32>
    %cst_8 = arith.constant dense<0.000000e+00> : vector<8x128xf32>
    %9 = tpu.matmul %7, %8, %cst_8 {dimension_numbers = #tpu.dot_dimension_numbers<[1], [0], [0], [1], [0, 0, 1, 1], [], []>} : vector<8x128xf32>, vector<128x128xf32>, vector<8x128xf32> -> vector<8x128xf32>
    %c0_9 = arith.constant 0 : index
    %c0_10 = arith.constant 0 : index
    %10 = vector.load %arg4[%c0_9, %c0_10] : memref<1x128xf32, #tpu.memory_space<vmem>>, vector<1x128xf32>
    %11 = vector.broadcast %10 : vector<1x128xf32> to vector<8x128xf32>
    %12 = arith.addf %9, %11 : vector<8x128xf32>
    %cst_11 = arith.constant 0.000000e+00 : f32
    %13 = vector.broadcast %cst_11 : f32 to vector<8x128xf32>
    %14 = arith.maximumf %12, %13 : vector<8x128xf32>
    %c0_12 = arith.constant 0 : index
    %c0_13 = arith.constant 0 : index
    %15 = vector.load %arg5[%c0_12, %c0_13] : memref<128x128xf32, #tpu.memory_space<vmem>>, vector<128x128xf32>
    %cst_14 = arith.constant dense<0.000000e+00> : vector<8x128xf32>
    %16 = tpu.matmul %14, %15, %cst_14 {dimension_numbers = #tpu.dot_dimension_numbers<[1], [0], [0], [1], [0, 0, 1, 1], [], []>} : vector<8x128xf32>, vector<128x128xf32>, vector<8x128xf32> -> vector<8x128xf32>
    %c0_15 = arith.constant 0 : index
    %c0_16 = arith.constant 0 : index
    %17 = vector.load %arg6[%c0_15, %c0_16] : memref<1x128xf32, #tpu.memory_space<vmem>>, vector<1x128xf32>
    %18 = vector.broadcast %17 : vector<1x128xf32> to vector<8x128xf32>
    %19 = arith.addf %16, %18 : vector<8x128xf32>
    %20 = tpu.iota {dimensions = array<i32: 1>} : vector<8x128xi32>
    %c16_i32 = arith.constant 16 : i32
    %21 = vector.broadcast %c16_i32 : i32 to vector<8x128xi32>
    %22 = arith.cmpi slt, %20, %21 : vector<8x128xi32>
    %cst_17 = arith.constant 0xFF800000 : f32
    %23 = vector.broadcast %cst_17 : f32 to vector<8x128xf32>
    %24 = arith.select %22, %19, %23 : vector<8x128xi1>, vector<8x128xf32>
    %cst_18 = arith.constant dense<0xFF800000> : vector<8xf32>
    %25 = vector.multi_reduction <maximumf>, %24, %cst_18 [1] : vector<8x128xf32> to vector<8xf32>
    %26 = vector.shape_cast %25 : vector<8xf32> to vector<8x1xf32>
    %27 = vector.broadcast %26 : vector<8x1xf32> to vector<8x128xf32>
    %28 = arith.subf %24, %27 : vector<8x128xf32>
    %29 = math.exp %28 : vector<8x128xf32>
    %cst_19 = arith.constant dense<0.000000e+00> : vector<8xf32>
    %30 = vector.multi_reduction <add>, %29, %cst_19 [1] : vector<8x128xf32> to vector<8xf32>
    %31 = vector.shape_cast %30 : vector<8xf32> to vector<8x1xf32>
    %32 = tpu.reciprocal %31 {approx = true} : vector<8x1xf32> -> vector<8x1xf32>
    %33 = vector.broadcast %32 : vector<8x1xf32> to vector<8x128xf32>
    %34 = arith.mulf %29, %33 : vector<8x128xf32>
    %c16_i32_20 = arith.constant 16 : i32
    %35 = vector.broadcast %c16_i32_20 : i32 to vector<8x128xi32>
    %36 = arith.cmpi eq, %20, %35 : vector<8x128xi32>
    %37 = arith.select %36, %19, %34 : vector<8x128xi1>, vector<8x128xf32>
    %c0_21 = arith.constant 0 : index
    %c0_22 = arith.constant 0 : index
    %38 = vector.load %arg7[%c0_21, %c0_22] : memref<8x128xf32, #tpu.memory_space<vmem>>, vector<8x128xf32>
    tpu.vector_store %arg7[%c0_21, %c0_22], %37 {strides = array<i32>} : memref<8x128xf32, #tpu.memory_space<vmem>>, vector<8x128xf32>,
    return
  }
}

</mosaic_0001>

<llo_original>
// kernel: actor_critic_forward.1
$region0: #{actor_critic_forward.1}
  #allocation0 [shape = 'u32[]', space=smem, size = 0x4, offset = 0x4, fixed_abs, tag = 'smem constant byte address 0x4 - core index']
  #allocation1 [shape = 'u32[144,128]{1,0:T(1,128)}', space=vmem, size = 0x12000, scoped, tag = 'internal scratch']
  %s0 = inlined_call_operand.vmem [shape: f32[8,32], index: 0, kind: input, shape index: {}]
  %s1 = inlined_call_operand.vmem [shape: f32[32,128], index: 1, kind: input, shape index: {}]
  %s2 = inlined_call_operand.vmem [shape: f32[1,128], index: 2, kind: input, shape index: {}]
  %s3 = inlined_call_operand.vmem [shape: f32[128,128], index: 3, kind: input, shape index: {}]
  %s4 = inlined_call_operand.vmem [shape: f32[1,128], index: 4, kind: input, shape index: {}]
  %s5 = inlined_call_operand.vmem [shape: f32[128,128], index: 5, kind: input, shape index: {}]
  %s6 = inlined_call_operand.vmem [shape: f32[1,128], index: 6, kind: input, shape index: {}]
  %s7 = inlined_call_operand.vmem [shape: f32[8,128], index: 7, kind: output, shape index: {}]
  %s8 = sld [smem:[#allocation0]]
  $region38: #{actor_critic_forward.1} parent=0
    _
  %s10 = ssub.s32 1, %s8
  %s11 = scalar_select 0, %s10, %s8
  // Predicated region
  $region2: #{actor_critic_forward.1} parent=0 // pred_check
    _
  $region3: #{actor_critic_forward.1} parent=0 // pred_check_branch
    %13 = sbr.rel (0) target = $region5
  $region4: #{actor_critic_forward.1} parent=0 // pred_region
    _
  $region5: #{actor_critic_forward.1} parent=0 // pred_fallthru
    _
  // Predicated region
  $region6: #{actor_critic_forward.1} parent=0 // pred_check
    _
  $region7: #{actor_critic_forward.1} parent=0 // pred_check_branch
    %15 = sbr.rel (0) target = $region9
  $region8: #{actor_critic_forward.1} parent=0 // pred_region
    _
  $region9: #{actor_critic_forward.1} parent=0 // pred_fallthru
    _
  // Predicated region
  $region10: #{actor_critic_forward.1} parent=0 // pred_check
    _
  $region11: #{actor_critic_forward.1} parent=0 // pred_check_branch
    %17 = sbr.rel (0) target = $region13
  $region12: #{actor_critic_forward.1} parent=0 // pred_region
    _
  $region13: #{actor_critic_forward.1} parent=0 // pred_fallthru
    _
  // Predicated region
  $region14: #{actor_critic_forward.1} parent=0 // pred_check
    _
  $region15: #{actor_critic_forward.1} parent=0 // pred_check_branch
    %19 = sbr.rel (0) target = $region17
  $region16: #{actor_critic_forward.1} parent=0 // pred_region
    _
  $region17: #{actor_critic_forward.1} parent=0 // pred_fallthru
    _
  // Predicated region
  $region18: #{actor_critic_forward.1} parent=0 // pred_check
    _
  $region19: #{actor_critic_forward.1} parent=0 // pred_check_branch
    %21 = sbr.rel (0) target = $region21
  $region20: #{actor_critic_forward.1} parent=0 // pred_region
    _
  $region21: #{actor_critic_forward.1} parent=0 // pred_fallthru
    _
  // Predicated region
  $region22: #{actor_critic_forward.1} parent=0 // pred_check
    _
  $region23: #{actor_critic_forward.1} parent=0 // pred_check_branch
    %23 = sbr.rel (0) target = $region25
  $region24: #{actor_critic_forward.1} parent=0 // pred_region
    _
  $region25: #{actor_critic_forward.1} parent=0 // pred_fallthru
    _
  // Predicated region
  $region26: #{actor_critic_forward.1} parent=0 // pred_check
    _
  $region27: #{actor_critic_forward.1} parent=0 // pred_check_branch
    %25 = sbr.rel (0) target = $region29
  $region28: #{actor_critic_forward.1} parent=0 // pred_region
    _
  $region29: #{actor_critic_forward.1} parent=0 // pred_fallthru
    _
  %v26 = vld [vmem:[%s0] sm:$0xff]
  %v27 = vld [vmem:[%s1] sm:$0xff]
  %v28 = vld [vmem:[%s1 + $0x8] sm:$0xff]
  %v29 = vld [vmem:[%s1 + $0x10] sm:$0xff]
  %v30 = vld [vmem:[%s1 + $0x18] sm:$0xff]
  %v31 = vld [vmem:[%s2] sm:$0x1]
  %v33 = vlaneseq
  %v34 = vshrl.u32 %v33, 7
  %v35 = vsub.s32 0, %v34
  %v36 = vrot.slane %v31, %v35
  %vm38 = vcmask 261120
  %v40 = vsel %vm38, %v26, 0
  %42 = vmatprep.subr.mxu0 0.0
  %43 = vmatpush1.msra.mxu0 %v27
  %44 = vmatprep.subr.mxu0 0.0
  %45 = vmatpush1.msra.mxu0 %v28
  %46 = vmatprep.subr.mxu0 0.0
  %47 = vmatpush1.msra.mxu0 %v29
  %48 = vmatprep.subr.mxu0 0.0
  %49 = vmatpush1.msra.mxu0 %v30
  %50 = vmatprep.subr.mxu0 0.0
  %51 = vmatpush1.msra.mxu0 0.0
  %52 = vmatprep.subr.mxu0 0.0
  %53 = vmatpush1.msra.mxu0 0.0
  %54 = vmatprep.subr.mxu0 0.0
  %55 = vmatpush1.msra.mxu0 0.0
  %56 = vmatprep.subr.mxu0 0.0
  %57 = vmatpush1.msra.mxu0 0.0
  %58 = vmatprep.subr.mxu0 0.0
  %59 = vmatpush1.msra.mxu0 0.0
  %60 = vmatprep.subr.mxu0 0.0
  %61 = vmatpush1.msra.mxu0 0.0
  %62 = vmatprep.subr.mxu0 0.0
  %63 = vmatpush1.msra.mxu0 0.0
  %64 = vmatprep.subr.mxu0 0.0
  %65 = vmatpush1.msra.mxu0 0.0
  %66 = vmatprep.subr.mxu0 0.0
  %67 = vmatpush1.msra.mxu0 0.0
  %68 = vmatprep.subr.mxu0 0.0
  %69 = vmatpush1.msra.mxu0 0.0
  %70 = vmatprep.subr.mxu0 0.0
  %71 = vmatpush1.msra.mxu0 0.0
  %72 = vmatprep.subr.mxu0 0.0
  %73 = vmatpush1.msra.mxu0 0.0
  %74 = vmatprep.subr.mxu0 0.0
  %75 = vmatpush1.msra.mxu0 0.0
  %76 = vmatprep.subr.mxu0 0.0
  %77 = vmatpush1.msra.mxu0 0.0
  %78 = vmatprep.subr.mxu0 0.0
  %79 = vmatpush1.msra.mxu0 0.0
  %80 = vmatprep.subr.mxu0 0.0
  %81 = vmatpush1.msra.mxu0 0.0
  %82 = vmatprep.subr.mxu0 0.0
  %83 = vmatpush1.msra.mxu0 0.0
  %84 = vmatprep.subr.mxu0 0.0
  %85 = vmatpush1.msra.mxu0 0.0
  %86 = vmatprep.subr.mxu0 0.0
  %87 = vmatpush1.msra.mxu0 0.0
  %88 = vmatprep.subr.mxu0 0.0
  %89 = vmatpush1.msra.mxu0 0.0
  %90 = vmatprep.subr.mxu0 0.0
  %91 = vmatpush1.msra.mxu0 0.0
  %92 = vmatprep.subr.mxu0 0.0
  %93 = vmatpush1.msra.mxu0 0.0
  %94 = vmatprep.subr.mxu0 0.0
  %95 = vmatpush1.msra.mxu0 0.0
  %96 = vmatprep.subr.mxu0 0.0
  %97 = vmatpush1.msra.mxu0 0.0
  %98 = vmatprep.subr.mxu0 0.0
  %99 = vmatpush1.msra.mxu0 0.0
  %100 = vmatprep.subr.mxu0 0.0
  %101 = vmatpush1.msra.mxu0 0.0
  %102 = vmatprep.subr.mxu0 0.0
  %103 = vmatpush1.msra.mxu0 0.0
  %104 = vmatprep.subr.mxu0 0.0
  %105 = vmatpush1.msra.mxu0 0.0
  %106 = vmatprep.mubr.f32.mxu0 0.0
  %107 = vmatmul.mubr.f32.gmra.mrb[0].mxu0 %v40
  %v108 = vpop.f32.mrb[0].mxu0
  %v109 = vadd.f32 %v36, %v108
  %v110 = vpop.f32.mrb[0].mxu0
  %111 = vdwg.mxu0
  %v112 = vmax.f32 %v109, 0.0
  %v113 = vld [vmem:[%s3] sm:$0xff]
  %v114 = vld [vmem:[%s3 + $0x8] sm:$0xff]
  %v115 = vld [vmem:[%s3 + $0x10] sm:$0xff]
  %v116 = vld [vmem:[%s3 + $0x18] sm:$0xff]
  %v117 = vld [vmem:[%s3 + $0x20] sm:$0xff]
  %v118 = vld [vmem:[%s3 + $0x28] sm:$0xff]
  %v119 = vld [vmem:[%s3 + $0x30] sm:$0xff]
  %v120 = vld [vmem:[%s3 + $0x38] sm:$0xff]
  %v121 = vld [vmem:[%s3 + $0x40] sm:$0xff]
  %v122 = vld [vmem:[%s3 + $0x48] sm:$0xff]
  %v123 = vld [vmem:[%s3 + $0x50] sm:$0xff]
  %v124 = vld [vmem:[%s3 + $0x58] sm:$0xff]
  %v125 = vld [vmem:[%s3 + $0x60] sm:$0xff]
  %v126 = vld [vmem:[%s3 + $0x68] sm:$0xff]
  %v127 = vld [vmem:[%s3 + $0x70] sm:$0xff]
  %v128 = vld [vmem:[%s3 + $0x78] sm:$0xff]
  %v129 = vld [vmem:[%s4] sm:$0x1]
  %v131 = vlaneseq
  %v132 = vshrl.u32 %v131, 7
  %v133 = vsub.s32 0, %v132
  %v134 = vrot.slane %v129, %v133
  %136 = vmatprep.subr.mxu0 0.0
  %137 = vmatpush1.msra.mxu0 %v113
  %138 = vmatprep.subr.mxu0 0.0
  %139 = vmatpush1.msra.mxu0 %v114
  %140 = vmatprep.subr.mxu0 0.0
  %141 = vmatpush1.msra.mxu0 %v115
  %142 = vmatprep.subr.mxu0 0.0
  %143 = vmatpush1.msra.mxu0 %v116
  %144 = vmatprep.subr.mxu0 0.0
  %145 = vmatpush1.msra.mxu0 %v117
  %146 = vmatprep.subr.mxu0 0.0
  %147 = vmatpush1.msra.mxu0 %v118
  %148 = vmatprep.subr.mxu0 0.0
  %149 = vmatpush1.msra.mxu0 %v119
  %150 = vmatprep.subr.mxu0 0.0
  %151 = vmatpush1.msra.mxu0 %v120
  %152 = vmatprep.subr.mxu0 0.0
  %153 = vmatpush1.msra.mxu0 %v121
  %154 = vmatprep.subr.mxu0 0.0
  %155 = vmatpush1.msra.mxu0 %v122
  %156 = vmatprep.subr.mxu0 0.0
  %157 = vmatpush1.msra.mxu0 %v123
  %158 = vmatprep.subr.mxu0 0.0
  %159 = vmatpush1.msra.mxu0 %v124
  %160 = vmatprep.subr.mxu0 0.0
  %161 = vmatpush1.msra.mxu0 %v125
  %162 = vmatprep.subr.mxu0 0.0
  %163 = vmatpush1.msra.mxu0 %v126
  %164 = vmatprep.subr.mxu0 0.0
  %165 = vmatpush1.msra.mxu0 %v127
  %166 = vmatprep.subr.mxu0 0.0
  %167 = vmatpush1.msra.mxu0 %v128
  %168 = vmatprep.subr.mxu0 0.0
  %169 = vmatpush1.msra.mxu0 0.0
  %170 = vmatprep.subr.mxu0 0.0
  %171 = vmatpush1.msra.mxu0 0.0
  %172 = vmatprep.subr.mxu0 0.0
  %173 = vmatpush1.msra.mxu0 0.0
  %174 = vmatprep.subr.mxu0 0.0
  %175 = vmatpush1.msra.mxu0 0.0
  %176 = vmatprep.subr.mxu0 0.0
  %177 = vmatpush1.msra.mxu0 0.0
  %178 = vmatprep.subr.mxu0 0.0
  %179 = vmatpush1.msra.mxu0 0.0
  %180 = vmatprep.subr.mxu0 0.0
  %181 = vmatpush1.msra.mxu0 0.0
  %182 = vmatprep.subr.mxu0 0.0
  %183 = vmatpush1.msra.mxu0 0.0
  %184 = vmatprep.subr.mxu0 0.0
  %185 = vmatpush1.msra.mxu0 0.0
  %186 = vmatprep.subr.mxu0 0.0
  %187 = vmatpush1.msra.mxu0 0.0
  %188 = vmatprep.subr.mxu0 0.0
  %189 = vmatpush1.msra.mxu0 0.0
  %190 = vmatprep.subr.mxu0 0.0
  %191 = vmatpush1.msra.mxu0 0.0
  %192 = vmatprep.subr.mxu0 0.0
  %193 = vmatpush1.msra.mxu0 0.0
  %194 = vmatprep.subr.mxu0 0.0
  %195 = vmatpush1.msra.mxu0 0.0
  %196 = vmatprep.subr.mxu0 0.0
  %197 = vmatpush1.msra.mxu0 0.0
  %198 = vmatprep.subr.mxu0 0.0
  %199 = vmatpush1.msra.mxu0 0.0
  %200 = vmatprep.mubr.f32.mxu0 0.0
  %201 = vmatmul.mubr.f32.gmra.mrb[0].mxu0 %v112
  %v202 = vpop.f32.mrb[0].mxu0
  %v203 = vadd.f32 %v134, %v202
  %v204 = vpop.f32.mrb[0].mxu0
  %205 = vdwg.mxu0
  %v206 = vmax.f32 %v203, 0.0
  %v207 = vld [vmem:[%s5] sm:$0xff]
  %v208 = vld [vmem:[%s5 + $0x8] sm:$0xff]
  %v209 = vld [vmem:[%s5 + $0x10] sm:$0xff]
  %v210 = vld [vmem:[%s5 + $0x18] sm:$0xff]
  %v211 = vld [vmem:[%s5 + $0x20] sm:$0xff]
  %v212 = vld [vmem:[%s5 + $0x28] sm:$0xff]
  %v213 = vld [vmem:[%s5 + $0x30] sm:$0xff]
  %v214 = vld [vmem:[%s5 + $0x38] sm:$0xff]
  %v215 = vld [vmem:[%s5 + $0x40] sm:$0xff]
  %v216 = vld [vmem:[%s5 + $0x48] sm:$0xff]
  %v217 = vld [vmem:[%s5 + $0x50] sm:$0xff]
  %v218 = vld [vmem:[%s5 + $0x58] sm:$0xff]
  %v219 = vld [vmem:[%s5 + $0x60] sm:$0xff]
  %v220 = vld [vmem:[%s5 + $0x68] sm:$0xff]
  %v221 = vld [vmem:[%s5 + $0x70] sm:$0xff]
  %v222 = vld [vmem:[%s5 + $0x78] sm:$0xff]
  %v223 = vld [vmem:[%s6] sm:$0x1]
  %v225 = vlaneseq
  %v226 = vshrl.u32 %v225, 7
  %v227 = vsub.s32 0, %v226
  %v228 = vrot.slane %v223, %v227
  %230 = vmatprep.subr.mxu0 0.0
  %231 = vmatpush1.msra.mxu0 %v207
  %232 = vmatprep.subr.mxu0 0.0
  %233 = vmatpush1.msra.mxu0 %v208
  %234 = vmatprep.subr.mxu0 0.0
  %235 = vmatpush1.msra.mxu0 %v209
  %236 = vmatprep.subr.mxu0 0.0
  %237 = vmatpush1.msra.mxu0 %v210
  %238 = vmatprep.subr.mxu0 0.0
  %239 = vmatpush1.msra.mxu0 %v211
  %240 = vmatprep.subr.mxu0 0.0
  %241 = vmatpush1.msra.mxu0 %v212
  %242 = vmatprep.subr.mxu0 0.0
  %243 = vmatpush1.msra.mxu0 %v213
  %244 = vmatprep.subr.mxu0 0.0
  %245 = vmatpush1.msra.mxu0 %v214
  %246 = vmatprep.subr.mxu0 0.0
  %247 = vmatpush1.msra.mxu0 %v215
  %248 = vmatprep.subr.mxu0 0.0
  %249 = vmatpush1.msra.mxu0 %v216
  %250 = vmatprep.subr.mxu0 0.0
  %251 = vmatpush1.msra.mxu0 %v217
  %252 = vmatprep.subr.mxu0 0.0
  %253 = vmatpush1.msra.mxu0 %v218
  %254 = vmatprep.subr.mxu0 0.0
  %255 = vmatpush1.msra.mxu0 %v219
  %256 = vmatprep.subr.mxu0 0.0
  %257 = vmatpush1.msra.mxu0 %v220
  %258 = vmatprep.subr.mxu0 0.0
  %259 = vmatpush1.msra.mxu0 %v221
  %260 = vmatprep.subr.mxu0 0.0
  %261 = vmatpush1.msra.mxu0 %v222
  %262 = vmatprep.subr.mxu0 0.0
  %263 = vmatpush1.msra.mxu0 0.0
  %264 = vmatprep.subr.mxu0 0.0
  %265 = vmatpush1.msra.mxu0 0.0
  %266 = vmatprep.subr.mxu0 0.0
  %267 = vmatpush1.msra.mxu0 0.0
  %268 = vmatprep.subr.mxu0 0.0
  %269 = vmatpush1.msra.mxu0 0.0
  %270 = vmatprep.subr.mxu0 0.0
  %271 = vmatpush1.msra.mxu0 0.0
  %272 = vmatprep.subr.mxu0 0.0
  %273 = vmatpush1.msra.mxu0 0.0
  %274 = vmatprep.subr.mxu0 0.0
  %275 = vmatpush1.msra.mxu0 0.0
  %276 = vmatprep.subr.mxu0 0.0
  %277 = vmatpush1.msra.mxu0 0.0
  %278 = vmatprep.subr.mxu0 0.0
  %279 = vmatpush1.msra.mxu0 0.0
  %280 = vmatprep.subr.mxu0 0.0
  %281 = vmatpush1.msra.mxu0 0.0
  %282 = vmatprep.subr.mxu0 0.0
  %283 = vmatpush1.msra.mxu0 0.0
  %284 = vmatprep.subr.mxu0 0.0
  %285 = vmatpush1.msra.mxu0 0.0
  %286 = vmatprep.subr.mxu0 0.0
  %287 = vmatpush1.msra.mxu0 0.0
  %288 = vmatprep.subr.mxu0 0.0
  %289 = vmatpush1.msra.mxu0 0.0
  %290 = vmatprep.subr.mxu0 0.0
  %291 = vmatpush1.msra.mxu0 0.0
  %292 = vmatprep.subr.mxu0 0.0
  %293 = vmatpush1.msra.mxu0 0.0
  %294 = vmatprep.mubr.f32.mxu0 0.0
  %295 = vmatmul.mubr.f32.gmra.mrb[0].mxu0 %v206
  %v296 = vpop.f32.mrb[0].mxu0
  %v297 = vadd.f32 %v228, %v296
  %v298 = vpop.f32.mrb[0].mxu0
  %299 = vdwg.mxu0
  %v300 = vlaneseq
  %v301 = vand.u32 %v300, 127
  %vm302 = vcmp.lt.s32.totalorder %v301, 16
  %v303 = vsel %vm302, %v297, -inf
  %304 = vmax.xlane.f32.xlu0 %v303
  %v305 = vpop.xlane.xlu0 %304
  %v306 = vsub.f32 %v303, %v305
  %v307 = vmul.f32 %v306, 1.442695
  %v308 = vpow.pop %v307
  %309 = vadd.xlane.f32.xlu0 %v308
  %v310 = vpop.xlane.xlu0 %309
  %v311 = vrcp.pop %v310
  %v312 = vmul.f32 %v308, %v311
  %vm313 = vcmp.eq.s32.totalorder %v301, 16
  %v314 = vsel %vm313, %v297, %v312
  %315 = vst [vmem:[%s7] sm:$0xff] %v314
  // Predicated region
  $region30: #{actor_critic_forward.1} parent=0 // pred_check
    _
  $region31: #{actor_critic_forward.1} parent=0 // pred_check_branch
    %317 = sbr.rel (0) target = $region33
  $region32: #{actor_critic_forward.1} parent=0 // pred_region
    _
  $region33: #{actor_critic_forward.1} parent=0 // pred_fallthru
    _
  // Predicated region
  $region34: #{actor_critic_forward.1} parent=0 // pred_check
    _
  $region35: #{actor_critic_forward.1} parent=0 // pred_check_branch
    %319 = sbr.rel (0) target = $region37
  $region36: #{actor_critic_forward.1} parent=0 // pred_region
    _
  $region37: #{actor_critic_forward.1} parent=0 // pred_fallthru
    _

</llo_original>
